<compile_context>
chip_gen: v5e
topology: v5e:2x2
jax: 0.10.0
libtpu: 0.0.40
codegen_flags: <defaults>
</compile_context>

<pallas_src>
import jax
import jax.numpy as jnp
from jax.experimental import pallas as pl
from jax.experimental.pallas import tpu as pltpu

EPS = 1e-5          # nn.BatchNorm2d default eps
NEG_SLOPE = 0.01    # nn.LeakyReLU default negative_slope


# ------------------------------------------------------------ device query --

def _vmem_capacity_bytes():
    try:
        info = pltpu.get_tpu_info()
        cap = getattr(info, "vmem_capacity_bytes", None)
        if cap:
            return int(cap)
    except Exception:
        pass
    return 64 * 1024 * 1024          # conservative default (v7x per-core VMEM)


def _pick_tm(M, *, Cin, Cmain, C1, vmem_budget_bytes):
    """Largest lane tile TM (multiple of 128 that divides M) whose per-step
    working set fits the VMEM budget; small/awkward problems stay resident."""
    pad8 = lambda c: ((c + 7) // 8) * 8
    per_col_bytes = 4 * (2 * pad8(2 * Cin)     # double-buffered packed-tap input
                         + 2 * pad8(Cmain)     # output window
                         + 6 * pad8(C1))       # y / z / y2 + temporaries
    cap = (vmem_budget_bytes // per_col_bytes // 128) * 128
    if M % 128 != 0 or M <= max(cap, 128):
        return M
    tm = min(cap, M)
    while tm >= 128:
        if M % tm == 0:
            return tm
        tm -= 128
    return M


# ----------------------------------------------------------------- kernel ---

def _make_block_kernel(*, Cin, Cmain, inv_m, sr1):
    """Fused Block kernel.  Grid = (3 BN passes, M // TM lane tiles).
    Layout: activations (channels, lanes); channels on sublanes, spatial on
    lanes -> lane-dense stores and dense VPU work at tiny channel counts."""

    def kernel(xt_ref, wc_ref, w2_ref, gb1_ref, gb2_ref, o_ref,
               acc1_ref, acc2_ref):
        p = pl.program_id(0)          # pass: 0 = stats1, 1 = stats2, 2 = emit
        j = pl.program_id(1)          # lane tile

        @pl.when(jnp.logical_and(p == 0, j == 0))
        def _init():
            acc1_ref[...] = jnp.zeros_like(acc1_ref)
            acc2_ref[...] = jnp.zeros_like(acc2_ref)

        # ---- stage 1: conv1 (+ shortcut conv fused as extra rows for sr==1).
        # Taps were packed in the wrapper, so this is ONE matmul, K = 2*Cin.
        xb = xt_ref[...]                                            # (2*Cin, TM)
        y = jnp.dot(wc_ref[...], xb,
                    preferred_element_type=jnp.float32)             # (C1, TM)

        @pl.when(p == 0)
        def _stats1():
            acc1_ref[:, 0:1] += jnp.sum(y, axis=1, keepdims=True)
            acc1_ref[:, 1:2] += jnp.sum(y * y, axis=1, keepdims=True)

        @pl.when(p >= 1)
        def _stage2():
            mean1 = acc1_ref[:, 0:1] * inv_m
            var1 = jnp.maximum(acc1_ref[:, 1:2] * inv_m - mean1 * mean1, 0.0)
            yn = (y - mean1) * jax.lax.rsqrt(var1 + EPS)
            yn = yn * gb1_ref[:, 0:1] + gb1_ref[:, 1:2]
            z = jnp.where(yn >= 0, yn, NEG_SLOPE * yn)              # (C1, TM)

            z1 = z[:Cmain, :]                                       # main branch
            y2 = jnp.dot(w2_ref[...], z1,
                         preferred_element_type=jnp.float32)        # (Cmain, TM)

            @pl.when(p == 1)
            def _stats2():
                acc2_ref[:, 0:1] += jnp.sum(y2, axis=1, keepdims=True)
                acc2_ref[:, 1:2] += jnp.sum(y2 * y2, axis=1, keepdims=True)

            @pl.when(p == 2)
            def _emit():
                mean2 = acc2_ref[:, 0:1] * inv_m
                var2 = jnp.maximum(acc2_ref[:, 1:2] * inv_m - mean2 * mean2, 0.0)
                y2n = (y2 - mean2) * jax.lax.rsqrt(var2 + EPS)
                y2n = y2n * gb2_ref[:, 0:1] + gb2_ref[:, 1:2]
                z2 = jnp.where(y2n >= 0, y2n, NEG_SLOPE * y2n)
                # conv-BN-LReLU shortcut (sr==1) or identity shortcut (= tap 0).
                shortcut = z[Cmain:, :] if sr1 else xb[:Cin, :]
                o_ref[...] = shortcut + z2

    return kernel


# --------------------------------------------------------------- wrapper ----

def block_forward(x_nchw, params, size_reduction, tm=None):
    """Block forward: NCHW in, NCHW out (matches the PyTorch module)."""
    N, Cin, H, W = x_nchw.shape
    sr1 = (size_reduction == 1)
    Cmain = int(params["w1"].shape[0])
    if sr1:
        assert H % 2 == 0, "size_reduction==1 requires even H"
        Hout = H // 2
    else:
        assert Cmain == Cin
        Hout = H
    M = N * Hout * W                  # flattened output spatial (lane axis)
    K = 2 * Cin                       # merged conv taps (contraction depth)

    x = x_nchw.astype(jnp.float32)

    # ---- pack the two (2,1)-kernel taps once, channels/taps -> sublanes -----
    if sr1:
        # Stride-2 taps: pure reshape/transpose, no duplication.
        xt = jnp.transpose(x.reshape(N, Cin, Hout, 2, W),
                           (3, 1, 0, 2, 4)).reshape(K, M)
        w1m = jnp.transpose(params["w1"][:, :, :, 0], (0, 2, 1)).reshape(Cmain, K)
        wsm = jnp.transpose(params["ws"][:, :, :, 0], (0, 2, 1)).reshape(Cmain, K)
        wc = jnp.concatenate([w1m, wsm], axis=0)          # (2*Cmain, 2*Cin)
        g1 = jnp.concatenate([params["g1"], params["gs"]])
        b1 = jnp.concatenate([params["b1"], params["bs"]])
    else:
        # ReflectionPad2d((0,0,0,1)): bottom pad row = row H-2.  Stride-1 taps
        # overlap -> packing duplicates the input 2x (see header TODO).
        x_pad = jnp.concatenate([x, x[:, :, H - 2:H - 1, :]], axis=2)
        taps = jnp.stack([x_pad[:, :, :H, :], x_pad[:, :, 1:, :]], axis=0)
        xt = jnp.transpose(taps, (0, 2, 1, 3, 4)).reshape(K, M)
        wc = jnp.transpose(params["w1"][:, :, :, 0], (0, 2, 1)).reshape(Cmain, K)
        g1, b1 = params["g1"], params["b1"]

    C1 = int(wc.shape[0])                                  # stage-1 channels
    gb1 = jnp.stack([g1, b1], axis=1)                      # (C1, 2)  [gamma|beta]
    gb2 = jnp.stack([params["g2"], params["b2"]], axis=1)  # (Cmain, 2)
    w2m = params["w2"][:, :, 0, 0]                         # (Cmain, Cmain)

    # ---- VMEM-aware tiling & limits -----------------------------------------
    vmem_cap = _vmem_capacity_bytes()
    if tm is not None:
        TM = int(tm)
        assert M % TM == 0
    else:
        TM = _pick_tm(M, Cin=Cin, Cmain=Cmain, C1=C1,
                      vmem_budget_bytes=vmem_cap // 3)
    num_tiles = M // TM
    vmem_limit = int(min((vmem_cap * 3) // 4, 112 * 1024 * 1024))

    kernel = _make_block_kernel(Cin=Cin, Cmain=Cmain, inv_m=1.0 / float(M),
                                sr1=sr1)

    out = pl.pallas_call(
        kernel,
        out_shape=jax.ShapeDtypeStruct((Cmain, M), jnp.float32),
        grid=(3, num_tiles),          # (BN pass, lane tile); tile is innermost
        in_specs=[
            pl.BlockSpec((K, TM), lambda p, j: (0, j)),
            pl.BlockSpec((C1, K), lambda p, j: (0, 0)),
            pl.BlockSpec((Cmain, Cmain), lambda p, j: (0, 0)),
            pl.BlockSpec((C1, 2), lambda p, j: (0, 0)),
            pl.BlockSpec((Cmain, 2), lambda p, j: (0, 0)),
        ],
        # Gate the output window on the pass axis: it only advances (and is
        # only flushed to HBM) during the emit pass -> exactly one full write.
        out_specs=pl.BlockSpec((Cmain, TM),
                               lambda p, j: (0, jnp.where(p == 2, j, 0))),
        scratch_shapes=[pltpu.VMEM((C1, 2), jnp.float32),     # stage-1 sum|sum^2
                        pltpu.VMEM((Cmain, 2), jnp.float32)], # stage-2 sum|sum^2
        compiler_params=pltpu.CompilerParams(
            # pass axis is a hard sequential dependency; the lane-tile axis
            # feeds a shared stats accumulator, so neither can be "parallel".
            # TODO(synk): v7x dual-core split with per-core partial stats.
            dimension_semantics=("arbitrary", "arbitrary"),
            vmem_limit_bytes=vmem_limit),
    )(xt, wc, w2m, gb1, gb2)

    # (Cmain, M) -> NCHW only at the API boundary.
    return jnp.transpose(out.reshape(Cmain, N, Hout, W), (1, 0, 2, 3))


# ----------------------------------------------------------- pure-JAX ref ---

def _ref_conv_bn_lrelu(x, w, gamma, beta, stride):
    y = jax.lax.conv_general_dilated(
        x, w, window_strides=stride, padding="VALID",
        dimension_numbers=("NCHW", "OIHW", "NCHW"))
    mean = jnp.mean(y, axis=(0, 2, 3), keepdims=True)
    var = jnp.mean((y - mean) ** 2, axis=(0, 2, 3), keepdims=True)
    y = (y - mean) * jax.lax.rsqrt(var + EPS)
    y = y * gamma[None, :, None, None] + beta[None, :, None, None]
    return jnp.where(y >= 0, y, NEG_SLOPE * y)


def block_ref_sr1(x, p):
    sc = _ref_conv_bn_lrelu(x, p["ws"], p["gs"], p["bs"], (2, 1))
    y = _ref_conv_bn_lrelu(x, p["w1"], p["g1"], p["b1"], (2, 1))
    y = _ref_conv_bn_lrelu(y, p["w2"], p["g2"], p["b2"], (1, 1))
    return sc + y


def block_ref_sr0(x, p):
    N, C, H, W = x.shape
    x_pad = jnp.concatenate([x, x[:, :, H - 2:H - 1, :]], axis=2)   # reflect bottom
    y = _ref_conv_bn_lrelu(x_pad, p["w1"], p["g1"], p["b1"], (1, 1))
    y = _ref_conv_bn_lrelu(y, p["w2"], p["g2"], p["b2"], (1, 1))
    return x + y


# -------------------------------------------------------------------- main --

if __name__ == "__main__":
    key = jax.random.PRNGKey(0)
    keys = jax.random.split(key, 16)
    N, Cin, Cout, H, W = 2, 4, 8, 16, 16
    x = jax.random.normal(keys[0], (N, Cin, H, W), jnp.float32)

    # NOTE: Conv2d_N_REL constructs an InstanceNorm2d that is never used in
    # forward(), so it is intentionally omitted.  The Identity-norm branch
    # (height / kernel_h <= 1) is never hit at these shapes and is not modeled.

    # ---- size_reduction == 1 (conv shortcut, H halved, Cin -> Cout) --------
    p1 = dict(
        w1=0.3 * jax.random.normal(keys[1], (Cout, Cin, 2, 1), jnp.float32),
        w2=0.3 * jax.random.normal(keys[2], (Cout, Cout, 1, 1), jnp.float32),
        ws=0.3 * jax.random.normal(keys[3], (Cout, Cin, 2, 1), jnp.float32),
        g1=1.0 + 0.1 * jax.random.normal(keys[4], (Cout,), jnp.float32),
        b1=0.1 * jax.random.normal(keys[5], (Cout,), jnp.float32),
        g2=1.0 + 0.1 * jax.random.normal(keys[6], (Cout,), jnp.float32),
        b2=0.1 * jax.random.normal(keys[7], (Cout,), jnp.float32),
        gs=1.0 + 0.1 * jax.random.normal(keys[8], (Cout,), jnp.float32),
        bs=0.1 * jax.random.normal(keys[9], (Cout,), jnp.float32),
    )
    out1 = jax.block_until_ready(block_forward(x, p1, size_reduction=1))
    ref1 = block_ref_sr1(x, p1)
    assert out1.shape == (N, Cout, H // 2, W)
    err1 = float(jnp.max(jnp.abs(out1 - ref1)))
    assert jnp.allclose(out1, ref1, atol=2e-4, rtol=2e-4), f"sr=1 mismatch {err1:e}"

    # ---- size_reduction == 0 (identity shortcut, same shape, C -> C) -------
    C0 = Cin
    p0 = dict(
        w1=0.3 * jax.random.normal(keys[10], (C0, C0, 2, 1), jnp.float32),
        w2=0.3 * jax.random.normal(keys[11], (C0, C0, 1, 1), jnp.float32),
        g1=1.0 + 0.1 * jax.random.normal(keys[12], (C0,), jnp.float32),
        b1=0.1 * jax.random.normal(keys[13], (C0,), jnp.float32),
        g2=1.0 + 0.1 * jax.random.normal(keys[14], (C0,), jnp.float32),
        b2=0.1 * jax.random.normal(keys[15], (C0,), jnp.float32),
    )
    out0 = jax.block_until_ready(block_forward(x, p0, size_reduction=0))
    ref0 = block_ref_sr0(x, p0)
    assert out0.shape == (N, C0, H, W)
    err0 = float(jnp.max(jnp.abs(out0 - ref0)))
    assert jnp.allclose(out0, ref0, atol=2e-4, rtol=2e-4), f"sr=0 mismatch {err0:e}"

    print("KERNEL_OK")
</pallas_src>

<mosaic_0001>
module attributes {stable_mosaic.version = 11 : i64} {
  func.func @kernel(%arg0: i32, %arg1: i32, %arg2: memref<8x256xf32, #tpu.memory_space<vmem>>, %arg3: memref<16x8xf32, #tpu.memory_space<vmem>>, %arg4: memref<8x8xf32, #tpu.memory_space<vmem>>, %arg5: memref<16x2xf32, #tpu.memory_space<vmem>>, %arg6: memref<8x2xf32, #tpu.memory_space<vmem>>, %arg7: memref<8x256xf32, #tpu.memory_space<vmem>>, %arg8: memref<16x2xf32, #tpu.memory_space<vmem>>, %arg9: memref<8x2xf32, #tpu.memory_space<vmem>>) attributes {dimension_semantics = [#tpu.dimension_semantics<arbitrary>, #tpu.dimension_semantics<arbitrary>], iteration_bounds = array<i64: 3, 1>, scalar_prefetch = 0 : i64, scratch_operands = 2 : i64, tpu.core_type = #tpu.core_type<tc>, window_params = [{transform_indices = @transform_0, window_bounds = array<i64: 8, 256>}, {pipeline_mode = #tpu.pipeline_mode<synchronous>, transform_indices = @transform_1, window_bounds = array<i64: 16, 8>}, {pipeline_mode = #tpu.pipeline_mode<synchronous>, transform_indices = @transform_2, window_bounds = array<i64: 8, 8>}, {pipeline_mode = #tpu.pipeline_mode<synchronous>, transform_indices = @transform_3, window_bounds = array<i64: 16, 2>}, {pipeline_mode = #tpu.pipeline_mode<synchronous>, transform_indices = @transform_4, window_bounds = array<i64: 8, 2>}, {transform_indices = @transform_5, window_bounds = array<i64: 8, 256>}]} {
    %c0_i32 = arith.constant 0 : i32
    %0 = arith.cmpi eq, %arg0, %c0_i32 : i32
    %c0_i32_0 = arith.constant 0 : i32
    %1 = arith.cmpi eq, %arg1, %c0_i32_0 : i32
    %2 = arith.andi %0, %1 : i1
    %3 = arith.extui %2 : i1 to i32
    %c0_i32_1 = arith.constant 0 : i32
    %4 = arith.cmpi ne, %3, %c0_i32_1 : i32
    scf.if %4 {
      %cst_8 = arith.constant 0.000000e+00 : f32
      %14 = vector.broadcast %cst_8 : f32 to vector<16x2xf32>
      %c0_9 = arith.constant 0 : index
      %c0_10 = arith.constant 0 : index
      %15 = vector.load %arg8[%c0_9, %c0_10] : memref<16x2xf32, #tpu.memory_space<vmem>>, vector<16x2xf32>
      tpu.vector_store %arg8[%c0_9, %c0_10], %14 {strides = array<i32>} : memref<16x2xf32, #tpu.memory_space<vmem>>, vector<16x2xf32>,
      %cst_11 = arith.constant 0.000000e+00 : f32
      %16 = vector.broadcast %cst_11 : f32 to vector<8x2xf32>
      %c0_12 = arith.constant 0 : index
      %c0_13 = arith.constant 0 : index
      %17 = vector.load %arg9[%c0_12, %c0_13] : memref<8x2xf32, #tpu.memory_space<vmem>>, vector<8x2xf32>
      tpu.vector_store %arg9[%c0_12, %c0_13], %16 {strides = array<i32>} : memref<8x2xf32, #tpu.memory_space<vmem>>, vector<8x2xf32>,
    } else {
    }
    %c0 = arith.constant 0 : index
    %c0_2 = arith.constant 0 : index
    %5 = vector.load %arg2[%c0, %c0_2] : memref<8x256xf32, #tpu.memory_space<vmem>>, vector<8x256xf32>
    %c0_3 = arith.constant 0 : index
    %c0_4 = arith.constant 0 : index
    %6 = vector.load %arg3[%c0_3, %c0_4] : memref<16x8xf32, #tpu.memory_space<vmem>>, vector<16x8xf32>
    %cst = arith.constant dense<0.000000e+00> : vector<16x256xf32>
    %7 = tpu.matmul %6, %5, %cst {dimension_numbers = #tpu.dot_dimension_numbers<[1], [0], [0], [1], [0, 0, 1, 1], [], []>} : vector<16x8xf32>, vector<8x256xf32>, vector<16x256xf32> -> vector<16x256xf32>
    %c0_i32_5 = arith.constant 0 : i32
    %8 = arith.cmpi eq, %arg0, %c0_i32_5 : i32
    %9 = arith.extui %8 : i1 to i32
    %c0_i32_6 = arith.constant 0 : i32
    %10 = arith.cmpi ne, %9, %c0_i32_6 : i32
    scf.if %10 {
      %c0_8 = arith.constant 0 : index
      %c0_9 = arith.constant 0 : index
      %14 = vector.load %arg8[%c0_8, %c0_9] : memref<16x2xf32, #tpu.memory_space<vmem>>, vector<16x1xf32>
      %cst_10 = arith.constant dense<0.000000e+00> : vector<16xf32>
      %15 = vector.multi_reduction <add>, %7, %cst_10 [1] : vector<16x256xf32> to vector<16xf32>
      %16 = vector.shape_cast %15 : vector<16xf32> to vector<16x1xf32>
      %17 = arith.addf %14, %16 : vector<16x1xf32>
      %c0_11 = arith.constant 0 : index
      %c0_12 = arith.constant 0 : index
      %18 = vector.load %arg8[%c0_11, %c0_12] : memref<16x2xf32, #tpu.memory_space<vmem>>, vector<16x1xf32>
      tpu.vector_store %arg8[%c0_11, %c0_12], %17 {strides = array<i32>} : memref<16x2xf32, #tpu.memory_space<vmem>>, vector<16x1xf32>,
      %c0_13 = arith.constant 0 : index
      %c1 = arith.constant 1 : index
      %19 = vector.load %arg8[%c0_13, %c1] : memref<16x2xf32, #tpu.memory_space<vmem>>, vector<16x1xf32>
      %20 = arith.mulf %7, %7 : vector<16x256xf32>
      %cst_14 = arith.constant dense<0.000000e+00> : vector<16xf32>
      %21 = vector.multi_reduction <add>, %20, %cst_14 [1] : vector<16x256xf32> to vector<16xf32>
      %22 = vector.shape_cast %21 : vector<16xf32> to vector<16x1xf32>
      %23 = arith.addf %19, %22 : vector<16x1xf32>
      %c0_15 = arith.constant 0 : index
      %c1_16 = arith.constant 1 : index
      %24 = vector.load %arg8[%c0_15, %c1_16] : memref<16x2xf32, #tpu.memory_space<vmem>>, vector<16x1xf32>
      tpu.vector_store %arg8[%c0_15, %c1_16], %23 {strides = array<i32>} : memref<16x2xf32, #tpu.memory_space<vmem>>, vector<16x1xf32>,
    } else {
    }
    %c1_i32 = arith.constant 1 : i32
    %11 = arith.cmpi sge, %arg0, %c1_i32 : i32
    %12 = arith.extui %11 : i1 to i32
    %c0_i32_7 = arith.constant 0 : i32
    %13 = arith.cmpi ne, %12, %c0_i32_7 : i32
    scf.if %13 {
      %c0_8 = arith.constant 0 : index
      %c0_9 = arith.constant 0 : index
      %14 = vector.load %arg8[%c0_8, %c0_9] : memref<16x2xf32, #tpu.memory_space<vmem>>, vector<16x1xf32>
      %cst_10 = arith.constant 3.906250e-03 : f32
      %15 = vector.broadcast %cst_10 : f32 to vector<16x1xf32>
      %16 = arith.mulf %14, %15 : vector<16x1xf32>
      %c0_11 = arith.constant 0 : index
      %c1 = arith.constant 1 : index
      %17 = vector.load %arg8[%c0_11, %c1] : memref<16x2xf32, #tpu.memory_space<vmem>>, vector<16x1xf32>
      %cst_12 = arith.constant 3.906250e-03 : f32
      %18 = vector.broadcast %cst_12 : f32 to vector<16x1xf32>
      %19 = arith.mulf %17, %18 : vector<16x1xf32>
      %20 = arith.mulf %16, %16 : vector<16x1xf32>
      %21 = arith.subf %19, %20 : vector<16x1xf32>
      %cst_13 = arith.constant 0.000000e+00 : f32
      %22 = vector.broadcast %cst_13 : f32 to vector<16x1xf32>
      %23 = arith.maximumf %21, %22 : vector<16x1xf32>
      %24 = vector.broadcast %16 : vector<16x1xf32> to vector<16x256xf32>
      %25 = arith.subf %7, %24 : vector<16x256xf32>
      %cst_14 = arith.constant 9.99999974E-6 : f32
      %26 = vector.broadcast %cst_14 : f32 to vector<16x1xf32>
      %27 = arith.addf %23, %26 : vector<16x1xf32>
      %28 = math.rsqrt %27 : vector<16x1xf32>
      %29 = vector.broadcast %28 : vector<16x1xf32> to vector<16x256xf32>
      %30 = arith.mulf %25, %29 : vector<16x256xf32>
      %c0_15 = arith.constant 0 : index
      %c0_16 = arith.constant 0 : index
      %31 = vector.load %arg5[%c0_15, %c0_16] : memref<16x2xf32, #tpu.memory_space<vmem>>, vector<16x1xf32>
      %32 = vector.broadcast %31 : vector<16x1xf32> to vector<16x256xf32>
      %33 = arith.mulf %30, %32 : vector<16x256xf32>
      %c0_17 = arith.constant 0 : index
      %c1_18 = arith.constant 1 : index
      %34 = vector.load %arg5[%c0_17, %c1_18] : memref<16x2xf32, #tpu.memory_space<vmem>>, vector<16x1xf32>
      %35 = vector.broadcast %34 : vector<16x1xf32> to vector<16x256xf32>
      %36 = arith.addf %33, %35 : vector<16x256xf32>
      %cst_19 = arith.constant 0.000000e+00 : f32
      %37 = vector.broadcast %cst_19 : f32 to vector<16x256xf32>
      %38 = arith.cmpf oge, %36, %37 : vector<16x256xf32>
      %cst_20 = arith.constant 0.00999999977 : f32
      %39 = vector.broadcast %cst_20 : f32 to vector<16x256xf32>
      %40 = arith.mulf %39, %36 : vector<16x256xf32>
      %41 = arith.select %38, %36, %40 : vector<16x256xi1>, vector<16x256xf32>
      %42 = vector.extract_strided_slice %41 {offsets = [0, 0], sizes = [8, 256], strides = [1, 1]} : vector<16x256xf32> to vector<8x256xf32>
      %c0_21 = arith.constant 0 : index
      %c0_22 = arith.constant 0 : index
      %43 = vector.load %arg4[%c0_21, %c0_22] : memref<8x8xf32, #tpu.memory_space<vmem>>, vector<8x8xf32>
      %cst_23 = arith.constant dense<0.000000e+00> : vector<8x256xf32>
      %44 = tpu.matmul %43, %42, %cst_23 {dimension_numbers = #tpu.dot_dimension_numbers<[1], [0], [0], [1], [0, 0, 1, 1], [], []>} : vector<8x8xf32>, vector<8x256xf32>, vector<8x256xf32> -> vector<8x256xf32>
      %c1_i32_24 = arith.constant 1 : i32
      %45 = arith.cmpi eq, %arg0, %c1_i32_24 : i32
      %46 = arith.extui %45 : i1 to i32
      %c0_i32_25 = arith.constant 0 : i32
      %47 = arith.cmpi ne, %46, %c0_i32_25 : i32
      scf.if %47 {
        %c0_27 = arith.constant 0 : index
        %c0_28 = arith.constant 0 : index
        %51 = vector.load %arg9[%c0_27, %c0_28] : memref<8x2xf32, #tpu.memory_space<vmem>>, vector<8x1xf32>
        %cst_29 = arith.constant dense<0.000000e+00> : vector<8xf32>
        %52 = vector.multi_reduction <add>, %44, %cst_29 [1] : vector<8x256xf32> to vector<8xf32>
        %53 = vector.shape_cast %52 : vector<8xf32> to vector<8x1xf32>
        %54 = arith.addf %51, %53 : vector<8x1xf32>
        %c0_30 = arith.constant 0 : index
        %c0_31 = arith.constant 0 : index
        %55 = vector.load %arg9[%c0_30, %c0_31] : memref<8x2xf32, #tpu.memory_space<vmem>>, vector<8x1xf32>
        tpu.vector_store %arg9[%c0_30, %c0_31], %54 {strides = array<i32>} : memref<8x2xf32, #tpu.memory_space<vmem>>, vector<8x1xf32>,
        %c0_32 = arith.constant 0 : index
        %c1_33 = arith.constant 1 : index
        %56 = vector.load %arg9[%c0_32, %c1_33] : memref<8x2xf32, #tpu.memory_space<vmem>>, vector<8x1xf32>
        %57 = arith.mulf %44, %44 : vector<8x256xf32>
        %cst_34 = arith.constant dense<0.000000e+00> : vector<8xf32>
        %58 = vector.multi_reduction <add>, %57, %cst_34 [1] : vector<8x256xf32> to vector<8xf32>
        %59 = vector.shape_cast %58 : vector<8xf32> to vector<8x1xf32>
        %60 = arith.addf %56, %59 : vector<8x1xf32>
        %c0_35 = arith.constant 0 : index
        %c1_36 = arith.constant 1 : index
        %61 = vector.load %arg9[%c0_35, %c1_36] : memref<8x2xf32, #tpu.memory_space<vmem>>, vector<8x1xf32>
        tpu.vector_store %arg9[%c0_35, %c1_36], %60 {strides = array<i32>} : memref<8x2xf32, #tpu.memory_space<vmem>>, vector<8x1xf32>,
      } else {
      }
      %c2_i32 = arith.constant 2 : i32
      %48 = arith.cmpi eq, %arg0, %c2_i32 : i32
      %49 = arith.extui %48 : i1 to i32
      %c0_i32_26 = arith.constant 0 : i32
      %50 = arith.cmpi ne, %49, %c0_i32_26 : i32
      scf.if %50 {
        %c0_27 = arith.constant 0 : index
        %c0_28 = arith.constant 0 : index
        %51 = vector.load %arg9[%c0_27, %c0_28] : memref<8x2xf32, #tpu.memory_space<vmem>>, vector<8x1xf32>
        %cst_29 = arith.constant 3.906250e-03 : f32
        %52 = vector.broadcast %cst_29 : f32 to vector<8x1xf32>
        %53 = arith.mulf %51, %52 : vector<8x1xf32>
        %c0_30 = arith.constant 0 : index
        %c1_31 = arith.constant 1 : index
        %54 = vector.load %arg9[%c0_30, %c1_31] : memref<8x2xf32, #tpu.memory_space<vmem>>, vector<8x1xf32>
        %cst_32 = arith.constant 3.906250e-03 : f32
        %55 = vector.broadcast %cst_32 : f32 to vector<8x1xf32>
        %56 = arith.mulf %54, %55 : vector<8x1xf32>
        %57 = arith.mulf %53, %53 : vector<8x1xf32>
        %58 = arith.subf %56, %57 : vector<8x1xf32>
        %cst_33 = arith.constant 0.000000e+00 : f32
        %59 = vector.broadcast %cst_33 : f32 to vector<8x1xf32>
        %60 = arith.maximumf %58, %59 : vector<8x1xf32>
        %61 = vector.broadcast %53 : vector<8x1xf32> to vector<8x256xf32>
        %62 = arith.subf %44, %61 : vector<8x256xf32>
        %cst_34 = arith.constant 9.99999974E-6 : f32
        %63 = vector.broadcast %cst_34 : f32 to vector<8x1xf32>
        %64 = arith.addf %60, %63 : vector<8x1xf32>
        %65 = math.rsqrt %64 : vector<8x1xf32>
        %66 = vector.broadcast %65 : vector<8x1xf32> to vector<8x256xf32>
        %67 = arith.mulf %62, %66 : vector<8x256xf32>
        %c0_35 = arith.constant 0 : index
        %c0_36 = arith.constant 0 : index
        %68 = vector.load %arg6[%c0_35, %c0_36] : memref<8x2xf32, #tpu.memory_space<vmem>>, vector<8x1xf32>
        %69 = vector.broadcast %68 : vector<8x1xf32> to vector<8x256xf32>
        %70 = arith.mulf %67, %69 : vector<8x256xf32>
        %c0_37 = arith.constant 0 : index
        %c1_38 = arith.constant 1 : index
        %71 = vector.load %arg6[%c0_37, %c1_38] : memref<8x2xf32, #tpu.memory_space<vmem>>, vector<8x1xf32>
        %72 = vector.broadcast %71 : vector<8x1xf32> to vector<8x256xf32>
        %73 = arith.addf %70, %72 : vector<8x256xf32>
        %cst_39 = arith.constant 0.000000e+00 : f32
        %74 = vector.broadcast %cst_39 : f32 to vector<8x256xf32>
        %75 = arith.cmpf oge, %73, %74 : vector<8x256xf32>
        %cst_40 = arith.constant 0.00999999977 : f32
        %76 = vector.broadcast %cst_40 : f32 to vector<8x256xf32>
        %77 = arith.mulf %76, %73 : vector<8x256xf32>
        %78 = arith.select %75, %73, %77 : vector<8x256xi1>, vector<8x256xf32>
        %79 = vector.extract_strided_slice %41 {offsets = [8, 0], sizes = [8, 256], strides = [1, 1]} : vector<16x256xf32> to vector<8x256xf32>
        %80 = arith.addf %79, %78 : vector<8x256xf32>
        %c0_41 = arith.constant 0 : index
        %c0_42 = arith.constant 0 : index
        %81 = vector.load %arg7[%c0_41, %c0_42] : memref<8x256xf32, #tpu.memory_space<vmem>>, vector<8x256xf32>
        tpu.vector_store %arg7[%c0_41, %c0_42], %80 {strides = array<i32>} : memref<8x256xf32, #tpu.memory_space<vmem>>, vector<8x256xf32>,
      } else {
      }
    } else {
    }
    return
  }
  func.func @transform_0(%arg0: i32, %arg1: i32) -> (i32, i32) {
    %c0_i32 = arith.constant 0 : i32
    %c0_i32_0 = arith.constant 0 : i32
    return %c0_i32, %arg1 : i32, i32
  }
  func.func @transform_1(%arg0: i32, %arg1: i32) -> (i32, i32) {
    %c0_i32 = arith.constant 0 : i32
    %c0_i32_0 = arith.constant 0 : i32
    %c0_i32_1 = arith.constant 0 : i32
    return %c0_i32, %c0_i32_0 : i32, i32
  }
  func.func @transform_2(%arg0: i32, %arg1: i32) -> (i32, i32) {
    %c0_i32 = arith.constant 0 : i32
    %c0_i32_0 = arith.constant 0 : i32
    %c0_i32_1 = arith.constant 0 : i32
    return %c0_i32, %c0_i32_0 : i32, i32
  }
  func.func @transform_3(%arg0: i32, %arg1: i32) -> (i32, i32) {
    %c0_i32 = arith.constant 0 : i32
    %c0_i32_0 = arith.constant 0 : i32
    %c0_i32_1 = arith.constant 0 : i32
    return %c0_i32, %c0_i32_0 : i32, i32
  }
  func.func @transform_4(%arg0: i32, %arg1: i32) -> (i32, i32) {
    %c0_i32 = arith.constant 0 : i32
    %c0_i32_0 = arith.constant 0 : i32
    %c0_i32_1 = arith.constant 0 : i32
    return %c0_i32, %c0_i32_0 : i32, i32
  }
  func.func @transform_5(%arg0: i32, %arg1: i32) -> (i32, i32) {
    %c2_i32 = arith.constant 2 : i32
    %0 = arith.cmpi eq, %arg0, %c2_i32 : i32
    %c0_i32 = arith.constant 0 : i32
    %1 = arith.select %0, %arg1, %c0_i32 : i32
    %c0_i32_0 = arith.constant 0 : i32
    %c0_i32_1 = arith.constant 0 : i32
    return %c0_i32_0, %1 : i32, i32
  }
}

</mosaic_0001>

<llo_original>
// kernel: tpu_custom_call.1
$region0: #{tpu_custom_call.1}
  #allocation0 [shape = 'u32[]', space=smem, size = 0x4, offset = 0x4, fixed_abs, tag = 'smem constant byte address 0x4 - core index']
  #allocation1 [shape = 'u32[72,128]{1,0:T(1,128)}', space=vmem, size = 0x9000, scoped, tag = 'internal scratch']
  #allocation2 [shape = 'f32[16,2]{1,0:T(8,128)}', space=vmem, size = 0x2000, scoped, tag = 'scratch operand']
  #allocation3 [shape = 'f32[8,2]{1,0:T(8,128)}', space=vmem, size = 0x1000, scoped, tag = 'scratch operand']
  %s0 = inlined_call_operand.vmem [shape: f32[8,256], index: 0, kind: input, shape index: {}]
  %s1 = inlined_call_operand.vmem [shape: f32[16,8], index: 1, kind: input, shape index: {}]
  %s2 = inlined_call_operand.vmem [shape: f32[8,8], index: 2, kind: input, shape index: {}]
  %s3 = inlined_call_operand.vmem [shape: f32[16,2], index: 3, kind: input, shape index: {}]
  %s4 = inlined_call_operand.vmem [shape: f32[8,2], index: 4, kind: input, shape index: {}]
  %s5 = inlined_call_operand.hbm [shape: f32[8,256], index: 5, kind: output, shape index: {}]
  %s6 = sld [smem:[#allocation0]]
  $region73: #{tpu_custom_call.1} parent=0
    _
  %s8 = ssub.s32 1, %s6
  %s9 = scalar_select 0, %s8, %s6
  $region1: #{tpu_custom_call.1} parent=0
    #allocation4 [shape = 'u8[16384]{0}', space=vmem, size = 0x4000, scoped, tag = 'output window, operand 0']
    #allocation5 [shape = 's32[2]{0}', space=sflag, size = 0x8, scoped, tag = 'scoped memory for tpu_custom_call.1']
    %10 = vsyncpa [#allocation5], 0
    %s11 = scalar_lea.sflag [#allocation5], 1
    %12 = vsyncpa %s11, 0
    loop: start=0, step=1, limit=5
    $region2: #{tpu_custom_call.1} parent=1 // loop_pre_header
      _
    $region3: #{tpu_custom_call.1} parent=1 // loop_header
      %s14 = sphi 0, %s18
      %p15 = scmp.ge.s32.totalorder %s14, 5
      %s21 = sphi 0, %s33
      %s22 = sphi 0, %s29
      %s23 = sphi 0, %s21
      %s24 = sphi 0, %s22
      %s25 = sphi 0, %s23
      %s26 = sphi 0, %s24
      %s36 = sphi 0, %s38
      %s39 = sphi 0, %s36
      %s40 = sphi 0, %s39
      %s56 = sphi 0, %s40
      %s60 = sphi 0, %s60
      %s62 = sphi 0, %s60
      %s63 = sphi 0, %s62
      %s77 = sphi 0, %s63
      %s81 = sphi 0, %s81
      %s83 = sphi 0, %s81
      %s84 = sphi 0, %s83
      %s98 = sphi 0, %s84
      %s102 = sphi 0, %s102
      %s104 = sphi 0, %s102
      %s105 = sphi 0, %s104
      %s119 = sphi 0, %s105
      %s123 = sphi 0, %s123
      %s125 = sphi 0, %s123
      %s126 = sphi 0, %s125
      %s140 = sphi 0, %s126
      %s150 = sphi 0, %s152
      %s153 = sphi 0, %s150
      %s154 = sphi 0, %s153
      %s170 = sphi 0, %s154
    $region4: #{tpu_custom_call.1} parent=1 // loop_header_branch
      %17 = sbr.rel (%p15) target = $region8
    $region5: #{tpu_custom_call.1} parent=1 // loop_body
      %s19 = ssub.s32 %s14, 1
      %s20 = ssub.s32 %s14, 2
      %s27 = sadd.s32 1, %s22
      %p28 = scmp.ge.s32.totalorder %s27, 1
      %s29 = scalar_select %p28, 0, %s27
      %s30 = sadd.s32 1, %s21
      %s31 = scalar_select %p28, %s30, %s21
      %p32 = scmp.ge.s32.totalorder %s31, 3
      %s33 = scalar_select %p32, 0, %s31
      %s34 = ssub.s32 %s22, %s29
      %p35 = scmp.eq.s32.totalorder %s34, 0
      %s37 = sadd.s32 %s36, 1
      %s38 = scalar_select %p35, %s36, %s37
      %p41 = pneg %p35
      %p42 = scmp.eq.s32.totalorder %s14, 2
      %p43 = por %p41, %p42
      %p44 = scmp.ne.s32.totalorder %s36, %s39
      %p45 = scmp.eq.s32.totalorder %s14, 0
      %p46 = por %p44, %p45
      %p47 = scmp.ne.s32.totalorder %s36, %s39
      %p48 = scmp.eq.s32.totalorder %s19, 2
      %p49 = por %p47, %p48
      %p50 = scmp.ne.s32.totalorder %s39, %s40
      %p51 = scmp.eq.s32.totalorder %s19, 0
      %p52 = por %p50, %p51
      %p53 = scmp.ne.s32.totalorder %s39, %s40
      %p54 = scmp.eq.s32.totalorder %s20, 2
      %p55 = por %p53, %p54
      %p57 = scmp.ne.s32.totalorder %s40, %s56
      %p58 = scmp.eq.s32.totalorder %s20, 0
      %p59 = por %p57, %p58
      %s61 = sadd.s32 %s60, 1
      %p64 = scmp.eq.s32.totalorder %s14, 2
      %p65 = scmp.ne.s32.totalorder %s60, %s62
      %p66 = scmp.eq.s32.totalorder %s14, 0
      %p67 = por %p65, %p66
      %p68 = scmp.ne.s32.totalorder %s60, %s62
      %p69 = scmp.eq.s32.totalorder %s19, 2
      %p70 = por %p68, %p69
      %p71 = scmp.ne.s32.totalorder %s62, %s63
      %p72 = scmp.eq.s32.totalorder %s19, 0
      %p73 = por %p71, %p72
      %p74 = scmp.ne.s32.totalorder %s62, %s63
      %p75 = scmp.eq.s32.totalorder %s20, 2
      %p76 = por %p74, %p75
      %p78 = scmp.ne.s32.totalorder %s63, %s77
      %p79 = scmp.eq.s32.totalorder %s20, 0
      %p80 = por %p78, %p79
      %s82 = sadd.s32 %s81, 1
      %p85 = scmp.eq.s32.totalorder %s14, 2
      %p86 = scmp.ne.s32.totalorder %s81, %s83
      %p87 = scmp.eq.s32.totalorder %s14, 0
      %p88 = por %p86, %p87
      %p89 = scmp.ne.s32.totalorder %s81, %s83
      %p90 = scmp.eq.s32.totalorder %s19, 2
      %p91 = por %p89, %p90
      %p92 = scmp.ne.s32.totalorder %s83, %s84
      %p93 = scmp.eq.s32.totalorder %s19, 0
      %p94 = por %p92, %p93
      %p95 = scmp.ne.s32.totalorder %s83, %s84
      %p96 = scmp.eq.s32.totalorder %s20, 2
      %p97 = por %p95, %p96
      %p99 = scmp.ne.s32.totalorder %s84, %s98
      %p100 = scmp.eq.s32.totalorder %s20, 0
      %p101 = por %p99, %p100
      %s103 = sadd.s32 %s102, 1
      %p106 = scmp.eq.s32.totalorder %s14, 2
      %p107 = scmp.ne.s32.totalorder %s102, %s104
      %p108 = scmp.eq.s32.totalorder %s14, 0
      %p109 = por %p107, %p108
      %p110 = scmp.ne.s32.totalorder %s102, %s104
      %p111 = scmp.eq.s32.totalorder %s19, 2
      %p112 = por %p110, %p111
      %p113 = scmp.ne.s32.totalorder %s104, %s105
      %p114 = scmp.eq.s32.totalorder %s19, 0
      %p115 = por %p113, %p114
      %p116 = scmp.ne.s32.totalorder %s104, %s105
      %p117 = scmp.eq.s32.totalorder %s20, 2
      %p118 = por %p116, %p117
      %p120 = scmp.ne.s32.totalorder %s105, %s119
      %p121 = scmp.eq.s32.totalorder %s20, 0
      %p122 = por %p120, %p121
      %s124 = sadd.s32 %s123, 1
      %p127 = scmp.eq.s32.totalorder %s14, 2
      %p128 = scmp.ne.s32.totalorder %s123, %s125
      %p129 = scmp.eq.s32.totalorder %s14, 0
      %p130 = por %p128, %p129
      %p131 = scmp.ne.s32.totalorder %s123, %s125
      %p132 = scmp.eq.s32.totalorder %s19, 2
      %p133 = por %p131, %p132
      %p134 = scmp.ne.s32.totalorder %s125, %s126
      %p135 = scmp.eq.s32.totalorder %s19, 0
      %p136 = por %p134, %p135
      %p137 = scmp.ne.s32.totalorder %s125, %s126
      %p138 = scmp.eq.s32.totalorder %s20, 2
      %p139 = por %p137, %p138
      %p141 = scmp.ne.s32.totalorder %s126, %s140
      %p142 = scmp.eq.s32.totalorder %s20, 0
      %p143 = por %p141, %p142
      %p144 = scmp.eq.s32.totalorder %s21, 2
      %s145 = scalar_select %p144, %s22, 0
      %p146 = scmp.eq.s32.totalorder %s33, 2
      %s147 = scalar_select %p146, %s29, 0
      %s148 = ssub.s32 %s145, %s147
      %p149 = scmp.eq.s32.totalorder %s148, 0
      %s151 = sadd.s32 %s150, 1
      %s152 = scalar_select %p149, %s150, %s151
      %p155 = pneg %p149
      %p156 = scmp.eq.s32.totalorder %s14, 2
      %p157 = por %p155, %p156
      %p158 = scmp.ne.s32.totalorder %s150, %s153
      %p159 = scmp.eq.s32.totalorder %s14, 0
      %p160 = por %p158, %p159
      %p161 = scmp.ne.s32.totalorder %s150, %s153
      %p162 = scmp.eq.s32.totalorder %s19, 2
      %p163 = por %p161, %p162
      %p164 = scmp.ne.s32.totalorder %s153, %s154
      %p165 = scmp.eq.s32.totalorder %s19, 0
      %p166 = por %p164, %p165
      %p167 = scmp.ne.s32.totalorder %s153, %s154
      %p168 = scmp.eq.s32.totalorder %s20, 2
      %p169 = por %p167, %p168
      %p171 = scmp.ne.s32.totalorder %s154, %s170
      %p172 = scmp.eq.s32.totalorder %s20, 0
      %p173 = por %p171, %p172
      %p174 = scmp.le.s32.totalorder 1, %s14
      %p175 = scmp.lt.s32.totalorder %s14, 4
      %p176 = pnand %p174, %p175
      %p177 = pneg %p176
      // Predicated region
      $region9: #{tpu_custom_call.1} parent=5 // pred_check
        _
      $region10: #{tpu_custom_call.1} parent=5 // pred_check_branch
        %179 = sbr.rel (%p176) target = $region12
      $region11: #{tpu_custom_call.1} parent=5 // pred_region
        %s180 = ssub.s32 %s14, 1
        // Predicated region
        $region13: #{tpu_custom_call.1} parent=11 // pred_check
          %p181 = pneg %p52
        $region14: #{tpu_custom_call.1} parent=11 // pred_check_branch
          %183 = sbr.rel (%p181) target = $region16
        $region15: #{tpu_custom_call.1} parent=11 // pred_region
          %s184 = smul.u32 2, %s24
          %p185 = scmp.lt.s32.totalorder %s184, 1
          %s186 = scalar_select %p185, %s184, 1
          %s187 = smul.addr %s186, 8
          %s188 = scalar_lea.vmem %s0, %s187
          %s189 = smul.u32 2, %s24
        $region16: #{tpu_custom_call.1} parent=11 // pred_fallthru
          _
        // Predicated region
        $region17: #{tpu_custom_call.1} parent=11 // pred_check
          %p190 = pneg %p73
        $region18: #{tpu_custom_call.1} parent=11 // pred_check_branch
          %192 = sbr.rel (%p190) target = $region20
        $region19: #{tpu_custom_call.1} parent=11 // pred_region
          _
        $region20: #{tpu_custom_call.1} parent=11 // pred_fallthru
          _
        // Predicated region
        $region21: #{tpu_custom_call.1} parent=11 // pred_check
          %p193 = pneg %p94
        $region22: #{tpu_custom_call.1} parent=11 // pred_check_branch
          %195 = sbr.rel (%p193) target = $region24
        $region23: #{tpu_custom_call.1} parent=11 // pred_region
          _
        $region24: #{tpu_custom_call.1} parent=11 // pred_fallthru
          _
        // Predicated region
        $region25: #{tpu_custom_call.1} parent=11 // pred_check
          %p196 = pneg %p115
        $region26: #{tpu_custom_call.1} parent=11 // pred_check_branch
          %198 = sbr.rel (%p196) target = $region28
        $region27: #{tpu_custom_call.1} parent=11 // pred_region
          _
        $region28: #{tpu_custom_call.1} parent=11 // pred_fallthru
          _
        // Predicated region
        $region29: #{tpu_custom_call.1} parent=11 // pred_check
          %p199 = pneg %p136
        $region30: #{tpu_custom_call.1} parent=11 // pred_check_branch
          %201 = sbr.rel (%p199) target = $region32
        $region31: #{tpu_custom_call.1} parent=11 // pred_region
          _
        $region32: #{tpu_custom_call.1} parent=11 // pred_fallthru
          _
      $region12: #{tpu_custom_call.1} parent=5 // pred_fallthru
        _
      %p202 = scmp.lt.s32.totalorder %s14, 3
      // Predicated region
      $region33: #{tpu_custom_call.1} parent=5 // pred_check
        %p203 = pneg %p202
      $region34: #{tpu_custom_call.1} parent=5 // pred_check_branch
        %205 = sbr.rel (%p203) target = $region36
      $region35: #{tpu_custom_call.1} parent=5 // pred_region
        _
      $region36: #{tpu_custom_call.1} parent=5 // pred_fallthru
        _
      %p206 = scmp.le.s32.totalorder 1, %s14
      %p207 = scmp.lt.s32.totalorder %s14, 4
      %p208 = pnand %p206, %p207
      %p209 = pneg %p208
      // Predicated region
      $region37: #{tpu_custom_call.1} parent=5 // pred_check
        _
      $region38: #{tpu_custom_call.1} parent=5 // pred_check_branch
        %211 = sbr.rel (%p208) target = $region40
      $region39: #{tpu_custom_call.1} parent=5 // pred_region
        %s212 = ssub.s32 %s14, 1
        %s213 = smul.u32 2, %s24
        %p214 = scmp.lt.s32.totalorder %s213, 1
        %s215 = scalar_select %p214, %s213, 1
        %s216 = smul.addr %s215, 8
        %s217 = scalar_lea.vmem %s0, %s216
        %p218 = pneg %p52
        %p219 = pneg %p49
        %p220 = pneg %p73
        %p221 = pneg %p70
        %p222 = pneg %p94
        %p223 = pneg %p91
        %p224 = pneg %p115
        %p225 = pneg %p112
        %p226 = pneg %p136
        %p227 = pneg %p133
        %p228 = pneg %p166
        %p229 = pneg %p163
        %s230 = sand.u32 %s153, 1
        %s231 = scalar_lea.sflag [#allocation5], %s230
        %s232 = sand.u32 %s153, 1
        %s233 = smul.addr %s232, 16
        %s234 = scalar_lea.vmem [#allocation4], %s233
        %s235 = smul.u32 2, %s24
        %p236 = scmp.lt.s32.totalorder %s235, 1
        %s237 = scalar_select %p236, %s235, 1
        %s238 = smul.addr %s237, 8
        %s239 = scalar_lea.vmem %s0, %s238
        %s240 = smul.u32 2, %s24
        %p241 = scmp.eq.s32.totalorder %s23, 2
        %s242 = scalar_select %p241, %s24, 0
        %s243 = smul.u32 2, %s242
        %p244 = scmp.eq.s32.totalorder %s23, 0
        %p245 = scmp.eq.s32.totalorder %s24, 0
        %p246 = pnand %p244, %p245
        %p247 = pneg %p246
        // Predicated region
        $region41: #{tpu_custom_call.1} parent=39 // pred_check
          _
        $region42: #{tpu_custom_call.1} parent=39 // pred_check_branch
          %249 = sbr.rel (%p246) target = $region44
        $region43: #{tpu_custom_call.1} parent=39 // pred_region
          %vm250 = vcmask 15360
          %251 = vst.msk [vmem:[#allocation2] sm:$0xff] %vm250, 0.0
          %252 = vst.msk [vmem:[#allocation2 + $0x8] sm:$0xff] %vm250, 0.0
          %253 = vst.msk [vmem:[#allocation3] sm:$0xff] %vm250, 0.0
        $region44: #{tpu_custom_call.1} parent=39 // pred_fallthru
          _
        %v254 = vld [vmem:[%s239] sm:$0xff]
        %v255 = vld [vmem:[%s239 + $0x8] sm:$0xff]
        %v256 = vld [vmem:[%s1] sm:$0xff]
        %v257 = vld [vmem:[%s1 + $0x8] sm:$0xff]
        %vm258 = vcmask 64512
        %v260 = vsel %vm258, %v256, 0
        %v263 = vsel %vm258, %v257, 0
        %265 = vmatpush.msra.mxu0 0.0
        %266 = vmatpush.msra.mxu0 0.0
        %267 = vmatpush.msra.mxu0 0.0
        %268 = vmatpush.msra.mxu0 0.0
        %269 = vmatpush.msra.mxu0 0.0
        %270 = vmatpush.msra.mxu0 0.0
        %271 = vmatpush.msra.mxu0 0.0
        %272 = vmatpush.msra.mxu0 0.0
        %273 = vmatpush.msra.mxu0 0.0
        %274 = vmatpush.msra.mxu0 0.0
        %275 = vmatpush.msra.mxu0 0.0
        %276 = vmatpush.msra.mxu0 0.0
        %277 = vmatpush.msra.mxu0 0.0
        %278 = vmatpush.msra.mxu0 0.0
        %279 = vmatpush.msra.mxu0 0.0
        %280 = vmatpush.msra.mxu0 %v254
        %281 = vmatmul.f32.gmra.mxu0 %v260
        %v282 = vpop.f32.mrf.mxu0
        %v283 = vadd.f32 0.0, %v282
        %284 = vmatmul.f32.gmra.mxu0 %v263
        %v285 = vpop.f32.mrf.mxu0
        %v286 = vadd.f32 0.0, %v285
        %287 = vdwg.mxu0
        %288 = vmatpush.msra.mxu0 0.0
        %289 = vmatpush.msra.mxu0 0.0
        %290 = vmatpush.msra.mxu0 0.0
        %291 = vmatpush.msra.mxu0 0.0
        %292 = vmatpush.msra.mxu0 0.0
        %293 = vmatpush.msra.mxu0 0.0
        %294 = vmatpush.msra.mxu0 0.0
        %295 = vmatpush.msra.mxu0 0.0
        %296 = vmatpush.msra.mxu0 0.0
        %297 = vmatpush.msra.mxu0 0.0
        %298 = vmatpush.msra.mxu0 0.0
        %299 = vmatpush.msra.mxu0 0.0
        %300 = vmatpush.msra.mxu0 0.0
        %301 = vmatpush.msra.mxu0 0.0
        %302 = vmatpush.msra.mxu0 0.0
        %303 = vmatpush.msra.mxu0 %v255
        %304 = vmatmul.f32.gmra.mxu0 %v260
        %v305 = vpop.f32.mrf.mxu0
        %v306 = vadd.f32 0.0, %v305
        %307 = vmatmul.f32.gmra.mxu0 %v263
        %v308 = vpop.f32.mrf.mxu0
        %v309 = vadd.f32 0.0, %v308
        %310 = vdwg.mxu0
        // Predicated region
        $region45: #{tpu_custom_call.1} parent=39 // pred_check
          %p311 = pneg %p244
        $region46: #{tpu_custom_call.1} parent=39 // pred_check_branch
          %313 = sbr.rel (%p311) target = $region48
        $region47: #{tpu_custom_call.1} parent=39 // pred_region
          %v314 = vld [vmem:[#allocation2] sm:$0xff]
          %v315 = vld [vmem:[#allocation2 + $0x8] sm:$0xff]
          %v316 = vadd.f32 %v283, %v306
          %317 = vadd.xlane.f32.xlu0 %v316
          %v318 = vpop.xlane.xlu0 %317
          %v319 = vadd.f32 %v286, %v309
          %320 = vadd.xlane.f32.xlu0 %v319
          %v321 = vpop.xlane.xlu0 %320
          %v322 = vadd.f32 %v314, %v318
          %v323 = vadd.f32 %v315, %v321
          %vm324 = vcmask 7168
          %325 = vst.msk [vmem:[#allocation2] sm:$0xff] %vm324, %v322
          %326 = vst.msk [vmem:[#allocation2 + $0x8] sm:$0xff] %vm324, %v323
          %v327 = vld [vmem:[#allocation2] sm:$0xff]
          %v328 = vld [vmem:[#allocation2 + $0x8] sm:$0xff]
          %v329 = vmul.f32 %v283, %v283
          %v330 = vmul.f32 %v306, %v306
          %v331 = vmul.f32 %v286, %v286
          %v332 = vmul.f32 %v309, %v309
          %v333 = vadd.f32 %v329, %v330
          %334 = vadd.xlane.f32.xlu0 %v333
          %v335 = vpop.xlane.xlu0 %334
          %v336 = vadd.f32 %v331, %v332
          %337 = vadd.xlane.f32.xlu0 %v336
          %v338 = vpop.xlane.xlu0 %337
          %v339 = vadd.f32 %v327, %v335
          %v340 = vadd.f32 %v328, %v338
          %vm341 = vcmask 15368
          %342 = vst.msk [vmem:[#allocation2] sm:$0xff] %vm341, %v339
          %343 = vst.msk [vmem:[#allocation2 + $0x8] sm:$0xff] %vm341, %v340
        $region48: #{tpu_custom_call.1} parent=39 // pred_fallthru
          _
        %p344 = scmp.ge.s32.totalorder %s23, 1
        // Predicated region
        $region49: #{tpu_custom_call.1} parent=39 // pred_check
          %p345 = pneg %p344
        $region50: #{tpu_custom_call.1} parent=39 // pred_check_branch
          %347 = sbr.rel (%p345) target = $region52
        $region51: #{tpu_custom_call.1} parent=39 // pred_region
          %v348 = vld [vmem:[#allocation2] sm:$0xff]
          %v349 = vld [vmem:[#allocation2 + $0x8] sm:$0xff]
          %v350 = vmul.f32 %v348, 0.00390625
          %v351 = vmul.f32 %v349, 0.00390625
          %v352 = vmul.f32 %v350, %v350
          %v353 = vmul.f32 %v351, %v351
          %356 = vrot.lane.b32.xlu0 %v352, 1
          %v357 = vpop.permute.xlu0 %356
          %358 = vrot.lane.b32.xlu0 %v353, 1
          %v359 = vpop.permute.xlu0 %358
          %v362 = vsub.f32 %v350, %v357
          %v363 = vsub.f32 %v351, %v359
          %v364 = vmax.f32 %v362, 0.0
          %v365 = vmax.f32 %v363, 0.0
          %367 = vset.pattern.permute.xlu0 0
          %368 = vperm.xlu0 %367, %v350
          %v369 = vpop.permute.xlu0 %368
          %372 = vset.pattern.permute.xlu0 0
          %373 = vperm.xlu0 %372, %v351
          %v374 = vpop.permute.xlu0 %373
          %v376 = vsub.f32 %v283, %v369
          %v377 = vsub.f32 %v306, %v369
          %v378 = vsub.f32 %v286, %v374
          %v379 = vsub.f32 %v309, %v374
          %v380 = vadd.f32 %v364, 1e-05
          %v381 = vadd.f32 %v365, 1e-05
          %v382 = vrsqrt.pop %v380
          %v383 = vmul.f32 %v382, %v380
          %v384 = vmul.f32 %v383, %v382
          %v385 = vmul.f32 0.5, %v384
          %v386 = vsub.f32 1.5, %v385
          %v387 = vmul.f32 %v382, %v386
          %vm388 = vweird.f32 %v380
          %vm389 = vweird.f32 %v382
          %vm390 = vmor %vm388, %vm389
          %v391 = vsel %vm390, %v382, %v387
          %v392 = vrsqrt.pop %v381
          %v393 = vmul.f32 %v392, %v381
          %v394 = vmul.f32 %v393, %v392
          %v395 = vmul.f32 0.5, %v394
          %v396 = vsub.f32 1.5, %v395
          %v397 = vmul.f32 %v392, %v396
          %vm398 = vweird.f32 %v381
          %vm399 = vweird.f32 %v392
          %vm400 = vmor %vm398, %vm399
          %v401 = vsel %vm400, %v392, %v397
          %403 = vset.pattern.permute.xlu0 1
          %404 = vperm.xlu0 %403, %v391
          %v405 = vpop.permute.xlu0 %404
          %408 = vset.pattern.permute.xlu0 1
          %409 = vperm.xlu0 %408, %v401
          %v410 = vpop.permute.xlu0 %409
          %v412 = vmul.f32 %v376, %v405
          %v413 = vmul.f32 %v377, %v405
          %v414 = vmul.f32 %v378, %v410
          %v415 = vmul.f32 %v379, %v410
          %v416 = vld [vmem:[%s3] sm:$0xff]
          %v417 = vld [vmem:[%s3 + $0x8] sm:$0xff]
          %419 = vset.pattern.permute.xlu0 0
          %420 = vperm.xlu0 %419, %v416
          %v421 = vpop.permute.xlu0 %420
          %424 = vset.pattern.permute.xlu0 0
          %425 = vperm.xlu0 %424, %v417
          %v426 = vpop.permute.xlu0 %425
          %v428 = vmul.f32 %v412, %v421
          %v429 = vmul.f32 %v413, %v421
          %v430 = vmul.f32 %v414, %v426
          %v431 = vmul.f32 %v415, %v426
          %432 = vset.pattern.permute.xlu0 1
          %433 = vperm.xlu0 %432, %v416
          %v434 = vpop.permute.xlu0 %433
          %436 = vset.pattern.permute.xlu0 1
          %437 = vperm.xlu0 %436, %v417
          %v438 = vpop.permute.xlu0 %437
          %v440 = vadd.f32 %v428, %v434
          %v441 = vadd.f32 %v429, %v434
          %v442 = vadd.f32 %v430, %v438
          %v443 = vadd.f32 %v431, %v438
          %vm444 = vcmp.ge.f32.partialorder %v440, 0.0
          %vm445 = vcmp.ge.f32.partialorder %v441, 0.0
          %vm446 = vcmp.ge.f32.partialorder %v442, 0.0
          %vm447 = vcmp.ge.f32.partialorder %v443, 0.0
          %v448 = vmul.f32 %v440, 0.01
          %v449 = vmul.f32 %v441, 0.01
          %v450 = vmul.f32 %v442, 0.01
          %v451 = vmul.f32 %v443, 0.01
          %v452 = vsel %vm444, %v440, %v448
          %v453 = vsel %vm445, %v441, %v449
          %v454 = vsel %vm446, %v442, %v450
          %v455 = vsel %vm447, %v443, %v451
          %v456 = vld [vmem:[%s2] sm:$0xff]
          %v458 = vsel %vm258, %v456, 0
          %460 = vmatpush.msra.mxu0 0.0
          %461 = vmatpush.msra.mxu0 0.0
          %462 = vmatpush.msra.mxu0 0.0
          %463 = vmatpush.msra.mxu0 0.0
          %464 = vmatpush.msra.mxu0 0.0
          %465 = vmatpush.msra.mxu0 0.0
          %466 = vmatpush.msra.mxu0 0.0
          %467 = vmatpush.msra.mxu0 0.0
          %468 = vmatpush.msra.mxu0 0.0
          %469 = vmatpush.msra.mxu0 0.0
          %470 = vmatpush.msra.mxu0 0.0
          %471 = vmatpush.msra.mxu0 0.0
          %472 = vmatpush.msra.mxu0 0.0
          %473 = vmatpush.msra.mxu0 0.0
          %474 = vmatpush.msra.mxu0 0.0
          %475 = vmatpush.msra.mxu0 %v452
          %476 = vmatmul.f32.gmra.mxu0 %v458
          %v477 = vpop.f32.mrf.mxu0
          %v478 = vadd.f32 0.0, %v477
          %479 = vdwg.mxu0
          %480 = vmatpush.msra.mxu0 0.0
          %481 = vmatpush.msra.mxu0 0.0
          %482 = vmatpush.msra.mxu0 0.0
          %483 = vmatpush.msra.mxu0 0.0
          %484 = vmatpush.msra.mxu0 0.0
          %485 = vmatpush.msra.mxu0 0.0
          %486 = vmatpush.msra.mxu0 0.0
          %487 = vmatpush.msra.mxu0 0.0
          %488 = vmatpush.msra.mxu0 0.0
          %489 = vmatpush.msra.mxu0 0.0
          %490 = vmatpush.msra.mxu0 0.0
          %491 = vmatpush.msra.mxu0 0.0
          %492 = vmatpush.msra.mxu0 0.0
          %493 = vmatpush.msra.mxu0 0.0
          %494 = vmatpush.msra.mxu0 0.0
          %495 = vmatpush.msra.mxu0 %v453
          %496 = vmatmul.f32.gmra.mxu0 %v458
          %v497 = vpop.f32.mrf.mxu0
          %v498 = vadd.f32 0.0, %v497
          %499 = vdwg.mxu0
          %p500 = scmp.eq.s32.totalorder %s23, 1
          // Predicated region
          $region53: #{tpu_custom_call.1} parent=51 // pred_check
            %p501 = pneg %p500
          $region54: #{tpu_custom_call.1} parent=51 // pred_check_branch
            %503 = sbr.rel (%p501) target = $region56
          $region55: #{tpu_custom_call.1} parent=51 // pred_region
            %v504 = vld [vmem:[#allocation3] sm:$0xff]
            %v505 = vadd.f32 %v478, %v498
            %506 = vadd.xlane.f32.xlu0 %v505
            %v507 = vpop.xlane.xlu0 %506
            %v508 = vadd.f32 %v504, %v507
            %vm509 = vcmask 7168
            %510 = vst.msk [vmem:[#allocation3] sm:$0xff] %vm509, %v508
            %v511 = vld [vmem:[#allocation3] sm:$0xff]
            %v512 = vmul.f32 %v478, %v478
            %v513 = vmul.f32 %v498, %v498
            %v514 = vadd.f32 %v512, %v513
            %515 = vadd.xlane.f32.xlu0 %v514
            %v516 = vpop.xlane.xlu0 %515
            %v517 = vadd.f32 %v511, %v516
            %vm518 = vcmask 15368
            %519 = vst.msk [vmem:[#allocation3] sm:$0xff] %vm518, %v517
          $region56: #{tpu_custom_call.1} parent=51 // pred_fallthru
            _
          %p520 = scmp.eq.s32.totalorder %s23, 2
          // Predicated region
          $region57: #{tpu_custom_call.1} parent=51 // pred_check
            %p521 = pneg %p520
          $region58: #{tpu_custom_call.1} parent=51 // pred_check_branch
            %523 = sbr.rel (%p521) target = $region60
          $region59: #{tpu_custom_call.1} parent=51 // pred_region
            %v524 = vld [vmem:[#allocation3] sm:$0xff]
            %v525 = vmul.f32 %v524, 0.00390625
            %v526 = vmul.f32 %v525, %v525
            %528 = vrot.lane.b32.xlu0 %v526, 1
            %v529 = vpop.permute.xlu0 %528
            %v531 = vsub.f32 %v525, %v529
            %v532 = vmax.f32 %v531, 0.0
            %534 = vset.pattern.permute.xlu0 0
            %535 = vperm.xlu0 %534, %v525
            %v536 = vpop.permute.xlu0 %535
            %v538 = vsub.f32 %v478, %v536
            %v539 = vsub.f32 %v498, %v536
            %v540 = vadd.f32 %v532, 1e-05
            %v541 = vrsqrt.pop %v540
            %v542 = vmul.f32 %v541, %v540
            %v543 = vmul.f32 %v542, %v541
            %v544 = vmul.f32 0.5, %v543
            %v545 = vsub.f32 1.5, %v544
            %v546 = vmul.f32 %v541, %v545
            %vm547 = vweird.f32 %v540
            %vm548 = vweird.f32 %v541
            %vm549 = vmor %vm547, %vm548
            %v550 = vsel %vm549, %v541, %v546
            %552 = vset.pattern.permute.xlu0 1
            %553 = vperm.xlu0 %552, %v550
            %v554 = vpop.permute.xlu0 %553
            %v556 = vmul.f32 %v538, %v554
            %v557 = vmul.f32 %v539, %v554
            %v558 = vld [vmem:[%s4] sm:$0xff]
            %560 = vset.pattern.permute.xlu0 0
            %561 = vperm.xlu0 %560, %v558
            %v562 = vpop.permute.xlu0 %561
            %v564 = vmul.f32 %v556, %v562
            %v565 = vmul.f32 %v557, %v562
            %566 = vset.pattern.permute.xlu0 1
            %567 = vperm.xlu0 %566, %v558
            %v568 = vpop.permute.xlu0 %567
            %v570 = vadd.f32 %v564, %v568
            %v571 = vadd.f32 %v565, %v568
            %vm572 = vcmp.ge.f32.partialorder %v570, 0.0
            %vm573 = vcmp.ge.f32.partialorder %v571, 0.0
            %v574 = vmul.f32 %v570, 0.01
            %v575 = vmul.f32 %v571, 0.01
            %v576 = vsel %vm572, %v570, %v574
            %v577 = vsel %vm573, %v571, %v575
            %v578 = vadd.f32 %v454, %v576
            %v579 = vadd.f32 %v455, %v577
            %580 = vst [vmem:[%s234] sm:$0xff] %v578
            %581 = vst [vmem:[%s234 + $0x8] sm:$0xff] %v579
          $region60: #{tpu_custom_call.1} parent=51 // pred_fallthru
            _
        $region52: #{tpu_custom_call.1} parent=39 // pred_fallthru
          _
        %s582 = sand.u32 %s153, 1
        %s583 = scalar_lea.sflag [#allocation5], %s582
        %s584 = sand.u32 %s153, 1
        %s585 = smul.addr %s584, 16
        %s586 = scalar_lea.vmem [#allocation4], %s585
        // Predicated region
        $region61: #{tpu_custom_call.1} parent=39 // pred_check
          %p587 = pneg %p163
        $region62: #{tpu_custom_call.1} parent=39 // pred_check_branch
          %589 = sbr.rel (%p587) target = $region64
        $region63: #{tpu_custom_call.1} parent=39 // pred_region
          %p590 = scmp.eq.s32.totalorder %s23, 2
          %s591 = scalar_select %p590, %s24, 0
          %s592 = smul.u32 2, %s591
          %594 = vsyncadd %s583, 0
          %s595 = smul.addr %s592, 8
          %s596 = scalar_lea.hbm %s5, %s595
          %s598 = sshll.u32 %s586, 4
          %s599 = int_to_ptr.vmem [resolvable:$true] %s598
          %s600 = sshll.u32 %s596, 4
          %s601 = int_to_ptr.hbm [resolvable:$true] %s600
          %603 = dma.vmem_to_hbm [thread:$0]  %s599, 256, %s601, %s583
        $region64: #{tpu_custom_call.1} parent=39 // pred_fallthru
          _
      $region40: #{tpu_custom_call.1} parent=5 // pred_fallthru
        _
      %p604 = scmp.le.s32.totalorder 2, %s14
      // Predicated region
      $region65: #{tpu_custom_call.1} parent=5 // pred_check
        %p605 = pneg %p604
      $region66: #{tpu_custom_call.1} parent=5 // pred_check_branch
        %607 = sbr.rel (%p605) target = $region68
      $region67: #{tpu_custom_call.1} parent=5 // pred_region
        %s608 = ssub.s32 %s14, 2
        // Predicated region
        $region69: #{tpu_custom_call.1} parent=67 // pred_check
          %p609 = pneg %p169
        $region70: #{tpu_custom_call.1} parent=67 // pred_check_branch
          %611 = sbr.rel (%p609) target = $region72
        $region71: #{tpu_custom_call.1} parent=67 // pred_region
          %s612 = sand.u32 %s154, 1
          %s613 = scalar_lea.sflag [#allocation5], %s612
          %s614 = sand.u32 %s154, 1
          %s615 = smul.addr %s614, 16
          %s616 = scalar_lea.vmem [#allocation4], %s615
          %618 = dma.done %s613, 256
        $region72: #{tpu_custom_call.1} parent=67 // pred_fallthru
          _
      $region68: #{tpu_custom_call.1} parent=5 // pred_fallthru
        _
    $region6: #{tpu_custom_call.1} parent=1 // loop_footer
      %s18 = sadd.s32 1, %s14
    $region7: #{tpu_custom_call.1} parent=1 // loop_footer_branch
      %13 = sbr.rel target = $region3
    $region8: #{tpu_custom_call.1} parent=1 // loop_exit
      _
    %619 = vsyncpa [#allocation5], 1
    %s620 = scalar_lea.sflag [#allocation5], 1
    %621 = vsyncpa %s620, 1

</llo_original>
